<compile_context>
chip_gen: v5e
topology: v5e:2x2
jax: 0.10.0
libtpu: 0.0.40
codegen_flags: <defaults>
</compile_context>

<pallas_src>
import functools

import jax
import jax.numpy as jnp
from jax.experimental import pallas as pl
from jax.experimental.pallas import tpu as pltpu


_MAX_UNROLL = 8  # cap on batches per grid step (static kernel unroll)


def _shuffle_gather_kernel(idx_ref, x_ref, o_ref, *, precision):
    """One grid step = one (batch-block, channel-tile) tile.

    idx_ref: (1, remain_T, Bblk) int32 - kept source rows for these batches
    x_ref:   (T, Bblk*Ctile)           - patch rows, channels flattened on lanes
    o_ref:   (remain_T, Bblk*Ctile)
    """
    t_full = x_ref.shape[0]
    r_keep, bblk = idx_ref.shape[1], idx_ref.shape[2]
    chans = x_ref.shape[1] // bblk

    # Hoisted out of the batch loop (JAX does not CSE broadcasts).
    iota_t = jax.lax.broadcasted_iota(jnp.int32, (r_keep, t_full), 1)

    # bblk is capped (<= _MAX_UNROLL) by the tiler, so this static unroll stays
    # small and does not blow up code size or vreg live ranges.
    for b in range(bblk):
        idx_col = idx_ref[0, :, b:b + 1]                      # (remain_T, 1)
        onehot = (iota_t == idx_col).astype(x_ref.dtype)      # (remain_T, T)
        xb = x_ref[:, b * chans:(b + 1) * chans]              # (T, Ctile)
        # Gather = one-hot selection matrix @ patch tile, on the idle MXU.
        o_ref[:, b * chans:(b + 1) * chans] = jnp.dot(
            onehot, xb,
            preferred_element_type=jnp.float32,
            precision=precision,
        ).astype(o_ref.dtype)


def _vmem_capacity_bytes():
    """Physical VMEM per TensorCore; conservative fallback if the query fails."""
    try:
        return int(pltpu.get_tpu_info().vmem_capacity_bytes)
    except Exception:
        return 64 * 1024 * 1024  # v7x per-TC size; safe lower bound everywhere


def _choose_tiling(T, B, C, remain_t, itemsize, max_block_bytes):
    """Pick (bblk, ctile): each grid step's in+out blocks fit the byte budget,
    lane widths stay multiples of 128 (unmasked vst), the static per-batch
    unroll is bounded, and - when B allows - there are >= 2 grid steps so
    v7x's two TensorCores both get work and the DMA pipeline can overlap."""
    def block_bytes(lane_width):
        return (T + remain_t) * lane_width * itemsize

    legal_b = [d for d in range(1, B + 1)
               if B % d == 0 and (d == B or (d * C) % 128 == 0)]
    candidates = [d for d in legal_b
                  if d <= _MAX_UNROLL and block_bytes(d * C) <= max_block_bytes]
    if candidates:
        multi = [d for d in candidates if B // d >= 2]
        return (max(multi) if multi else max(candidates)), C

    if C % 128 == 0:
        # Even a single batch is too big for the budget (or unroll-capped
        # out): tile the channel axis in 128-lane multiples instead.
        ctiles = [c for c in range(128, C + 1, 128)
                  if C % c == 0 and block_bytes(c) <= max_block_bytes]
        return 1, (max(ctiles) if ctiles else 128)

    # Pathological small / non-128 C: lane tiling cannot stay 128-aligned, so
    # fall back to the smallest legal whole-C batch block (rare; may use
    # masked stores / exceed the budget, but stays correct).
    return min(legal_b), C


def patch_shuffle_gather(patches_tbc, forward_indexes, remain_t,
                         *, max_block_bytes=None):
    """out[t, b, :] = patches[forward_indexes[t, b], b, :] for t < remain_t."""
    T, B, C = patches_tbc.shape
    dtype = patches_tbc.dtype
    if remain_t < 1:
        raise ValueError(f"remain_t={remain_t} keeps no patches")

    if not jnp.issubdtype(dtype, jnp.floating):
        # TODO(synk): integer patch dtypes have no MXU path (v7x MXU is
        # fp8/bf16 only); this f32 round-trip is exact only for |x| < 2^24.
        out = patch_shuffle_gather(patches_tbc.astype(jnp.float32),
                                   forward_indexes, remain_t,
                                   max_block_bytes=max_block_bytes)
        return out.astype(dtype)

    itemsize = jnp.dtype(dtype).itemsize
    vmem_cap = _vmem_capacity_bytes()
    if max_block_bytes is None:
        # ~1/8 of physical VMEM per (in+out) block pair -> double-buffered
        # blocks use ~half of VMEM with headroom on every generation
        # (v5e/v6e: 128 MiB -> 16 MiB blocks, v7x: 64 MiB -> 8 MiB blocks).
        max_block_bytes = vmem_cap // 8

    bblk, ctile = _choose_tiling(T, B, C, remain_t, itemsize, max_block_bytes)
    nb, nc = B // bblk, C // ctile
    lane_block = bblk * ctile

    # Free reshape (trailing-dim merge) -- NOT an HBM transpose.
    x2d = patches_tbc.reshape(T, B * C)                          # (T, B*C)

    # Only the kept rows of the index table travel to the kernel, rearranged
    # per batch-block with the batch axis last (tiny array).
    kept_idx = forward_indexes[:remain_t].astype(jnp.int32)      # (remain_T, B)
    idx_blocks = jnp.transpose(
        kept_idx.reshape(remain_t, nb, bblk), (1, 0, 2))         # (nb, remain_T, Bblk)

    # Derive the scoped-VMEM limit from the actual (double-buffered) block
    # sizes instead of the per-generation scoped defaults.
    in_blk = T * lane_block * itemsize
    out_blk = remain_t * lane_block * itemsize
    idx_blk = remain_t * bblk * 4
    vmem_limit = int(min(vmem_cap,
                         2 * (in_blk + out_blk + idx_blk) + (4 << 20)))

    # HIGHEST is free here (kernel is HBM-bound, MXU idle) and makes the
    # one-hot gather bit-exact for arbitrary float32 data.
    precision = (jax.lax.Precision.HIGHEST if dtype == jnp.float32
                 else jax.lax.Precision.DEFAULT)

    bytes_accessed = (T + remain_t) * B * C * itemsize + idx_blocks.size * 4
    flops = 2 * remain_t * T * C * B                             # one-hot MXU gather

    out2d = pl.pallas_call(
        functools.partial(_shuffle_gather_kernel, precision=precision),
        out_shape=jax.ShapeDtypeStruct((remain_t, B * C), dtype),
        grid=(nb, nc),
        in_specs=[
            pl.BlockSpec((1, remain_t, bblk), lambda i, j: (i, 0, 0)),
            pl.BlockSpec((T, lane_block), lambda i, j: (0, i * nc + j)),
        ],
        out_specs=pl.BlockSpec((remain_t, lane_block), lambda i, j: (0, i * nc + j)),
        compiler_params=pltpu.CompilerParams(
            # Both axes are embarrassingly parallel -> sharded across v7x's
            # two TensorCores; neutral on single-TC v5e/v6e.
            dimension_semantics=("parallel", "parallel"),
            vmem_limit_bytes=vmem_limit,
        ),
        cost_estimate=pl.CostEstimate(
            flops=flops, transcendentals=0, bytes_accessed=bytes_accessed),
    )(idx_blocks, x2d)

    return out2d.reshape(remain_t, B, C)                         # free reshape


def patch_shuffle_forward(patches, ratio, key):
    """Full PatchShuffle.forward.

    Returns (patches_kept (remain_T, B, C), forward_indexes (T, B) int32,
    backward_indexes (T, B) int32).  Index generation runs on-device with
    jax.random (one independent permutation per batch, like the module's
    per-batch np.random.shuffle), so the whole forward is jittable.
    Indices are int32 (torch uses int64; int32 is the TPU-native choice).
    """
    T, B, C = patches.shape
    remain_t = int(T * (1 - ratio))
    if remain_t < 1:
        raise ValueError(f"ratio={ratio} keeps no patches (remain_T={remain_t})")

    keys = jax.random.split(key, B)
    fwd = jax.vmap(lambda k: jax.random.permutation(k, T))(keys)  # (B, T)
    fwd = fwd.astype(jnp.int32).T                                 # (T, B)
    bwd = jnp.argsort(fwd, axis=0).astype(jnp.int32)              # (T, B)

    kept = patch_shuffle_gather(patches, fwd, remain_t)
    return kept, fwd, bwd


if __name__ == "__main__":
    T, B, C = 8, 4, 128       # seq=8, batch=4, hidden=128
    ratio = 0.5               # keep remain_T = 4 patches
    remain_t = int(T * (1 - ratio))

    key = jax.random.PRNGKey(0)
    k_data, k_idx, k_wide = jax.random.split(key, 3)
    # Arbitrary f32 values: Precision.HIGHEST makes the MXU one-hot gather exact.
    patches = jax.random.normal(k_data, (T, B, C), dtype=jnp.float32)

    out, fwd_idx, bwd_idx = patch_shuffle_forward(patches, ratio, k_idx)
    out = jax.block_until_ready(out)

    # Pure-JAX reference for the gather (same as torch.gather + [:remain_T]).
    idx_full = jnp.broadcast_to(fwd_idx[:, :, None], (T, B, C))
    ref = jnp.take_along_axis(patches, idx_full, axis=0)[:remain_t]
    assert out.shape == (remain_t, B, C)
    assert jnp.allclose(out, ref), "Pallas gather mismatch vs reference"

    # backward_indexes must invert the shuffle (module invariant).
    shuffled_full = jnp.take_along_axis(patches, idx_full, axis=0)
    bwd_full = jnp.broadcast_to(bwd_idx[:, :, None], (T, B, C))
    restored = jnp.take_along_axis(shuffled_full, bwd_full, axis=0)
    assert jnp.allclose(restored, patches), "backward indexes do not invert"

    # Multi-batch-block path (grid=(4,1)) via a tiny VMEM budget.
    out2 = jax.block_until_ready(
        patch_shuffle_gather(patches, fwd_idx, remain_t, max_block_bytes=7_000))
    assert jnp.allclose(out2, ref), "multi-block path mismatch vs reference"

    # C-tiling fallback path (grid=(4,2)) when one batch exceeds the budget.
    patches_wide = jax.random.normal(k_wide, (T, B, 256), dtype=jnp.float32)
    out3 = jax.block_until_ready(
        patch_shuffle_gather(patches_wide, fwd_idx, remain_t,
                             max_block_bytes=8_000))
    idx_full_w = jnp.broadcast_to(fwd_idx[:, :, None], (T, B, 256))
    ref_w = jnp.take_along_axis(patches_wide, idx_full_w, axis=0)[:remain_t]
    assert jnp.allclose(out3, ref_w), "C-tiled path mismatch vs reference"

    print("KERNEL_OK")
</pallas_src>

<mosaic_0001>
module attributes {stable_mosaic.version = 11 : i64} {
  func.func @_shuffle_gather_kernel(%arg0: i32, %arg1: i32, %arg2: memref<1x4x2xi32, #tpu.memory_space<vmem>>, %arg3: memref<8x256xf32, #tpu.memory_space<vmem>>, %arg4: memref<4x256xf32, #tpu.memory_space<vmem>>) attributes {dimension_semantics = [#tpu.dimension_semantics<parallel>, #tpu.dimension_semantics<parallel>], iteration_bounds = array<i64: 2, 1>, scalar_prefetch = 0 : i64, scratch_operands = 0 : i64, tpu.core_type = #tpu.core_type<tc>, window_params = [{transform_indices = @transform_0, window_bounds = array<i64: 1, 4, 2>}, {transform_indices = @transform_1, window_bounds = array<i64: 8, 256>}, {transform_indices = @transform_2, window_bounds = array<i64: 4, 256>}]} {
    %0 = tpu.iota {dimensions = array<i32: 1>} : vector<4x8xi32>
    %c0 = arith.constant 0 : index
    %c0_0 = arith.constant 0 : index
    %c0_1 = arith.constant 0 : index
    %1 = vector.load %arg2[%c0, %c0_0, %c0_1] : memref<1x4x2xi32, #tpu.memory_space<vmem>>, vector<1x4x1xi32>
    %2 = vector.shape_cast %1 : vector<1x4x1xi32> to vector<4x1xi32>
    %3 = vector.broadcast %2 : vector<4x1xi32> to vector<4x8xi32>
    %4 = arith.cmpi eq, %0, %3 : vector<4x8xi32>
    %5 = arith.extui %4 : vector<4x8xi1> to vector<4x8xi32>
    %6 = arith.sitofp %5 : vector<4x8xi32> to vector<4x8xf32>
    %c0_2 = arith.constant 0 : index
    %c0_3 = arith.constant 0 : index
    %7 = vector.load %arg3[%c0_2, %c0_3] : memref<8x256xf32, #tpu.memory_space<vmem>>, vector<8x128xf32>
    %cst = arith.constant dense<0.000000e+00> : vector<4x128xf32>
    %8 = tpu.matmul %6, %7, %cst {dimension_numbers = #tpu.dot_dimension_numbers<[1], [0], [0], [1], [0, 0, 1, 1], [], []>, precision = #tpu.contract_precision<fp32>} : vector<4x8xf32>, vector<8x128xf32>, vector<4x128xf32> -> vector<4x128xf32>
    %c0_4 = arith.constant 0 : index
    %c0_5 = arith.constant 0 : index
    %9 = vector.load %arg4[%c0_4, %c0_5] : memref<4x256xf32, #tpu.memory_space<vmem>>, vector<4x128xf32>
    tpu.vector_store %arg4[%c0_4, %c0_5], %8 {strides = array<i32>} : memref<4x256xf32, #tpu.memory_space<vmem>>, vector<4x128xf32>,
    %c0_6 = arith.constant 0 : index
    %c0_7 = arith.constant 0 : index
    %c1 = arith.constant 1 : index
    %10 = vector.load %arg2[%c0_6, %c0_7, %c1] : memref<1x4x2xi32, #tpu.memory_space<vmem>>, vector<1x4x1xi32>
    %11 = vector.shape_cast %10 : vector<1x4x1xi32> to vector<4x1xi32>
    %12 = vector.broadcast %11 : vector<4x1xi32> to vector<4x8xi32>
    %13 = arith.cmpi eq, %0, %12 : vector<4x8xi32>
    %14 = arith.extui %13 : vector<4x8xi1> to vector<4x8xi32>
    %15 = arith.sitofp %14 : vector<4x8xi32> to vector<4x8xf32>
    %c0_8 = arith.constant 0 : index
    %c128 = arith.constant 128 : index
    %16 = vector.load %arg3[%c0_8, %c128] : memref<8x256xf32, #tpu.memory_space<vmem>>, vector<8x128xf32>
    %cst_9 = arith.constant dense<0.000000e+00> : vector<4x128xf32>
    %17 = tpu.matmul %15, %16, %cst_9 {dimension_numbers = #tpu.dot_dimension_numbers<[1], [0], [0], [1], [0, 0, 1, 1], [], []>, precision = #tpu.contract_precision<fp32>} : vector<4x8xf32>, vector<8x128xf32>, vector<4x128xf32> -> vector<4x128xf32>
    %c0_10 = arith.constant 0 : index
    %c128_11 = arith.constant 128 : index
    %18 = vector.load %arg4[%c0_10, %c128_11] : memref<4x256xf32, #tpu.memory_space<vmem>>, vector<4x128xf32>
    tpu.vector_store %arg4[%c0_10, %c128_11], %17 {strides = array<i32>} : memref<4x256xf32, #tpu.memory_space<vmem>>, vector<4x128xf32>,
    return
  }
  func.func @transform_0(%arg0: i32, %arg1: i32) -> (i32, i32, i32) {
    %c0_i32 = arith.constant 0 : i32
    %c0_i32_0 = arith.constant 0 : i32
    %c0_i32_1 = arith.constant 0 : i32
    return %arg0, %c0_i32, %c0_i32_0 : i32, i32, i32
  }
  func.func @transform_1(%arg0: i32, %arg1: i32) -> (i32, i32) {
    %c1_i32 = arith.constant 1 : i32
    %0 = arith.muli %arg0, %c1_i32 : i32
    %1 = arith.addi %0, %arg1 : i32
    %c0_i32 = arith.constant 0 : i32
    %c0_i32_0 = arith.constant 0 : i32
    return %c0_i32, %1 : i32, i32
  }
  func.func @transform_2(%arg0: i32, %arg1: i32) -> (i32, i32) {
    %c1_i32 = arith.constant 1 : i32
    %0 = arith.muli %arg0, %c1_i32 : i32
    %1 = arith.addi %0, %arg1 : i32
    %c0_i32 = arith.constant 0 : i32
    %c0_i32_0 = arith.constant 0 : i32
    return %c0_i32, %1 : i32, i32
  }
}

</mosaic_0001>

<llo_original>
// kernel: tpu_custom_call.1
$region0: #{tpu_custom_call.1}
  #allocation0 [shape = 'u32[]', space=smem, size = 0x4, offset = 0x4, fixed_abs, tag = 'smem constant byte address 0x4 - core index']
  #allocation1 [shape = 'u32[72,128]{1,0:T(1,128)}', space=vmem, size = 0x9000, scoped, tag = 'internal scratch']
  %s0 = inlined_call_operand.vmem [shape: s32[2,4,2], index: 0, kind: input, shape index: {}]
  %s1 = inlined_call_operand.hbm [shape: f32[8,512], index: 1, kind: input, shape index: {}]
  %s2 = inlined_call_operand.hbm [shape: f32[4,512], index: 2, kind: output, shape index: {}]
  %s3 = sld [smem:[#allocation0]]
  $region45: #{tpu_custom_call.1} parent=0
    _
  %s5 = ssub.s32 1, %s3
  %s6 = scalar_select 0, %s5, %s3
  $region1: #{tpu_custom_call.1} parent=0
    #allocation2 [shape = 'u8[16384]{0}', space=vmem, size = 0x4000, scoped, tag = 'input window, operand 1']
    #allocation3 [shape = 's32[2]{0}', space=sflag, size = 0x8, scoped, tag = 'scoped memory for tpu_custom_call.1']
    #allocation4 [shape = 's32[2]{0}', space=sflag, size = 0x8, scoped, tag = 'scoped memory for tpu_custom_call.1']
    #allocation5 [shape = 'u8[8192]{0}', space=vmem, size = 0x2000, scoped, tag = 'output window, operand 0']
    %7 = vsyncpa [#allocation3], 0
    %s8 = scalar_lea.sflag [#allocation3], 1
    %9 = vsyncpa %s8, 0
    %10 = vsyncpa [#allocation4], 0
    %s11 = scalar_lea.sflag [#allocation4], 1
    %12 = vsyncpa %s11, 0
    loop: start=0, step=1, limit=4
    $region2: #{tpu_custom_call.1} parent=1 // loop_pre_header
      _
    $region3: #{tpu_custom_call.1} parent=1 // loop_header
      %s14 = sphi 0, %s18
      %p15 = scmp.ge.s32.totalorder %s14, 4
      %s21 = sphi 0, %s33
      %s22 = sphi 0, %s29
      %s23 = sphi 0, %s21
      %s24 = sphi 0, %s22
      %s25 = sphi 0, %s23
      %s26 = sphi 0, %s24
      %s36 = sphi 0, %s38
      %s39 = sphi 0, %s36
      %s40 = sphi 0, %s39
      %s56 = sphi 0, %s40
      %s64 = sphi 0, %s66
      %s67 = sphi 0, %s64
      %s68 = sphi 0, %s67
      %s84 = sphi 0, %s68
      %s92 = sphi 0, %s94
      %s95 = sphi 0, %s92
      %s96 = sphi 0, %s95
      %s112 = sphi 0, %s96
    $region4: #{tpu_custom_call.1} parent=1 // loop_header_branch
      %17 = sbr.rel (%p15) target = $region8
    $region5: #{tpu_custom_call.1} parent=1 // loop_body
      %s19 = ssub.s32 %s14, 1
      %s20 = ssub.s32 %s14, 2
      %s27 = sadd.s32 1, %s22
      %p28 = scmp.ge.s32.totalorder %s27, 1
      %s29 = scalar_select %p28, 0, %s27
      %s30 = sadd.s32 1, %s21
      %s31 = scalar_select %p28, %s30, %s21
      %p32 = scmp.ge.s32.totalorder %s31, 2
      %s33 = scalar_select %p32, 0, %s31
      %s34 = ssub.s32 %s21, %s33
      %p35 = scmp.eq.s32.totalorder %s34, 0
      %s37 = sadd.s32 %s36, 1
      %s38 = scalar_select %p35, %s36, %s37
      %p41 = pneg %p35
      %p42 = scmp.eq.s32.totalorder %s14, 1
      %p43 = por %p41, %p42
      %p44 = scmp.ne.s32.totalorder %s36, %s39
      %p45 = scmp.eq.s32.totalorder %s14, 0
      %p46 = por %p44, %p45
      %p47 = scmp.ne.s32.totalorder %s36, %s39
      %p48 = scmp.eq.s32.totalorder %s19, 1
      %p49 = por %p47, %p48
      %p50 = scmp.ne.s32.totalorder %s39, %s40
      %p51 = scmp.eq.s32.totalorder %s19, 0
      %p52 = por %p50, %p51
      %p53 = scmp.ne.s32.totalorder %s39, %s40
      %p54 = scmp.eq.s32.totalorder %s20, 1
      %p55 = por %p53, %p54
      %p57 = scmp.ne.s32.totalorder %s40, %s56
      %p58 = scmp.eq.s32.totalorder %s20, 0
      %p59 = por %p57, %p58
      %s60 = sadd.s32 %s21, %s22
      %s61 = sadd.s32 %s33, %s29
      %s62 = ssub.s32 %s60, %s61
      %p63 = scmp.eq.s32.totalorder %s62, 0
      %s65 = sadd.s32 %s64, 1
      %s66 = scalar_select %p63, %s64, %s65
      %p69 = pneg %p63
      %p70 = scmp.eq.s32.totalorder %s14, 1
      %p71 = por %p69, %p70
      %p72 = scmp.ne.s32.totalorder %s64, %s67
      %p73 = scmp.eq.s32.totalorder %s14, 0
      %p74 = por %p72, %p73
      %p75 = scmp.ne.s32.totalorder %s64, %s67
      %p76 = scmp.eq.s32.totalorder %s19, 1
      %p77 = por %p75, %p76
      %p78 = scmp.ne.s32.totalorder %s67, %s68
      %p79 = scmp.eq.s32.totalorder %s19, 0
      %p80 = por %p78, %p79
      %p81 = scmp.ne.s32.totalorder %s67, %s68
      %p82 = scmp.eq.s32.totalorder %s20, 1
      %p83 = por %p81, %p82
      %p85 = scmp.ne.s32.totalorder %s68, %s84
      %p86 = scmp.eq.s32.totalorder %s20, 0
      %p87 = por %p85, %p86
      %s88 = sadd.s32 %s21, %s22
      %s89 = sadd.s32 %s33, %s29
      %s90 = ssub.s32 %s88, %s89
      %p91 = scmp.eq.s32.totalorder %s90, 0
      %s93 = sadd.s32 %s92, 1
      %s94 = scalar_select %p91, %s92, %s93
      %p97 = pneg %p91
      %p98 = scmp.eq.s32.totalorder %s14, 1
      %p99 = por %p97, %p98
      %p100 = scmp.ne.s32.totalorder %s92, %s95
      %p101 = scmp.eq.s32.totalorder %s14, 0
      %p102 = por %p100, %p101
      %p103 = scmp.ne.s32.totalorder %s92, %s95
      %p104 = scmp.eq.s32.totalorder %s19, 1
      %p105 = por %p103, %p104
      %p106 = scmp.ne.s32.totalorder %s95, %s96
      %p107 = scmp.eq.s32.totalorder %s19, 0
      %p108 = por %p106, %p107
      %p109 = scmp.ne.s32.totalorder %s95, %s96
      %p110 = scmp.eq.s32.totalorder %s20, 1
      %p111 = por %p109, %p110
      %p113 = scmp.ne.s32.totalorder %s96, %s112
      %p114 = scmp.eq.s32.totalorder %s20, 0
      %p115 = por %p113, %p114
      %p116 = scmp.le.s32.totalorder 1, %s14
      %p117 = scmp.lt.s32.totalorder %s14, 3
      %p118 = pnand %p116, %p117
      %p119 = pneg %p118
      // Predicated region
      $region9: #{tpu_custom_call.1} parent=5 // pred_check
        _
      $region10: #{tpu_custom_call.1} parent=5 // pred_check_branch
        %121 = sbr.rel (%p118) target = $region12
      $region11: #{tpu_custom_call.1} parent=5 // pred_region
        %s122 = ssub.s32 %s14, 1
      $region12: #{tpu_custom_call.1} parent=5 // pred_fallthru
        _
      %p123 = scmp.lt.s32.totalorder %s14, 2
      // Predicated region
      $region13: #{tpu_custom_call.1} parent=5 // pred_check
        %p124 = pneg %p123
      $region14: #{tpu_custom_call.1} parent=5 // pred_check_branch
        %126 = sbr.rel (%p124) target = $region16
      $region15: #{tpu_custom_call.1} parent=5 // pred_region
        // Predicated region
        $region17: #{tpu_custom_call.1} parent=15 // pred_check
          %p127 = pneg %p46
        $region18: #{tpu_custom_call.1} parent=15 // pred_check_branch
          %129 = sbr.rel (%p127) target = $region20
        $region19: #{tpu_custom_call.1} parent=15 // pred_region
          %p130 = scmp.lt.s32.totalorder %s21, 1
          %s131 = scalar_select %p130, %s21, 1
          %s132 = smul.addr %s131, 4
          %s133 = scalar_lea.vmem %s0, %s132
        $region20: #{tpu_custom_call.1} parent=15 // pred_fallthru
          _
        // Predicated region
        $region21: #{tpu_custom_call.1} parent=15 // pred_check
          %p134 = pneg %p74
        $region22: #{tpu_custom_call.1} parent=15 // pred_check_branch
          %136 = sbr.rel (%p134) target = $region24
        $region23: #{tpu_custom_call.1} parent=15 // pred_region
          %s137 = sand.u32 %s64, 1
          %s138 = scalar_lea.sflag [#allocation3], %s137
          %s139 = sand.u32 %s64, 1
          %s140 = smul.addr %s139, 16
          %s141 = scalar_lea.vmem [#allocation2], %s140
          %s142 = sadd.s32 %s21, %s22
          %s143 = smul.u32 2, %s142
          %145 = vsyncadd %s138, 0
          %s146 = smul.addr %s143, 8
          %s147 = scalar_lea.hbm %s1, %s146
          %s149 = sshll.u32 %s147, 4
          %s150 = int_to_ptr.hbm [resolvable:$true] %s149
          %s151 = sshll.u32 %s141, 4
          %s152 = int_to_ptr.vmem [resolvable:$true] %s151
          %154 = dma.hbm_to_vmem [thread:$0]  %s150, 256, %s152, %s138
        $region24: #{tpu_custom_call.1} parent=15 // pred_fallthru
          _
      $region16: #{tpu_custom_call.1} parent=5 // pred_fallthru
        _
      %p155 = scmp.le.s32.totalorder 1, %s14
      %p156 = scmp.lt.s32.totalorder %s14, 3
      %p157 = pnand %p155, %p156
      %p158 = pneg %p157
      // Predicated region
      $region25: #{tpu_custom_call.1} parent=5 // pred_check
        _
      $region26: #{tpu_custom_call.1} parent=5 // pred_check_branch
        %160 = sbr.rel (%p157) target = $region28
      $region27: #{tpu_custom_call.1} parent=5 // pred_region
        %s161 = ssub.s32 %s14, 1
        %s162 = sand.u32 %s67, 1
        %s163 = scalar_lea.sflag [#allocation3], %s162
        %s164 = sand.u32 %s67, 1
        %s165 = smul.addr %s164, 16
        %s166 = scalar_lea.vmem [#allocation2], %s165
        // Predicated region
        $region29: #{tpu_custom_call.1} parent=27 // pred_check
          %p167 = pneg %p80
        $region30: #{tpu_custom_call.1} parent=27 // pred_check_branch
          %169 = sbr.rel (%p167) target = $region32
        $region31: #{tpu_custom_call.1} parent=27 // pred_region
          %171 = dma.done %s163, 256
        $region32: #{tpu_custom_call.1} parent=27 // pred_fallthru
          _
        %p172 = scmp.lt.s32.totalorder %s23, 1
        %s173 = scalar_select %p172, %s23, 1
        %s174 = smul.addr %s173, 4
        %s175 = scalar_lea.vmem %s0, %s174
        %p176 = pneg %p52
        %p177 = pneg %p49
        %s178 = sand.u32 %s67, 1
        %s179 = scalar_lea.sflag [#allocation3], %s178
        %s180 = sand.u32 %s67, 1
        %s181 = smul.addr %s180, 16
        %s182 = scalar_lea.vmem [#allocation2], %s181
        %p183 = pneg %p80
        %p184 = pneg %p77
        %p185 = pneg %p108
        %p186 = pneg %p105
        %s187 = sand.u32 %s95, 1
        %s188 = scalar_lea.sflag [#allocation4], %s187
        %s189 = sand.u32 %s95, 1
        %s190 = smul.addr %s189, 8
        %s191 = scalar_lea.vmem [#allocation5], %s190
        %p192 = scmp.lt.s32.totalorder %s23, 1
        %s193 = scalar_select %p192, %s23, 1
        %s194 = smul.addr %s193, 4
        %s195 = scalar_lea.vmem %s0, %s194
        %s196 = sadd.s32 %s23, %s24
        %s197 = smul.u32 2, %s196
        %s198 = sadd.s32 %s23, %s24
        %s199 = smul.u32 2, %s198
        %v200 = vlaneseq
        %v201 = vand.u32 %v200, 127
        %v202 = vld [vmem:[%s195] sm:$0xf]
        %203 = vset.pattern.permute.xlu0 0
        %204 = vperm.xlu0 %203, %v202
        %v205 = vpop.permute.xlu0 %204
        %vm206 = vcmp.eq.s32.totalorder %v201, %v205
        %v207 = vsel %vm206, 1, 0
        %v208 = vcvt.s32.f32 %v207
        %v209 = vld [vmem:[%s166] sm:$0xff]
        %vm210 = vcmask 64512
        %v212 = vsel %vm210, %v208, 0
        %214 = vmatpush.msra.mxu0 0.0
        %215 = vmatpush.msra.mxu0 0.0
        %216 = vmatpush.msra.mxu0 0.0
        %217 = vmatpush.msra.mxu0 0.0
        %218 = vmatpush.msra.mxu0 0.0
        %219 = vmatpush.msra.mxu0 0.0
        %220 = vmatpush.msra.mxu0 0.0
        %221 = vmatpush.msra.mxu0 0.0
        %222 = vmatpush.msra.mxu0 0.0
        %223 = vmatpush.msra.mxu0 0.0
        %224 = vmatpush.msra.mxu0 0.0
        %225 = vmatpush.msra.mxu0 0.0
        %226 = vmatpush.msra.mxu0 0.0
        %227 = vmatpush.msra.mxu0 0.0
        %228 = vmatpush.msra.mxu0 0.0
        %v229 = vand.u32 %v209, 4294901760
        %230 = vmatpush.msra.mxu0 %v229
        %v231 = vand.u32 %v212, 4294901760
        %v232 = vsub.f32 %v212, %v231
        %v233 = vand.u32 %v232, 4294901760
        %v234 = vsub.f32 %v232, %v233
        %v235 = vand.u32 %v234, 4294901760
        %236 = vmatmul.f32.gmra.mxu0 %v235
        %v237 = vpop.f32.mrf.mxu0
        %v238 = vadd.f32 0.0, %v237
        %239 = vdwg.mxu0
        %240 = vmatpush.msra.mxu0 0.0
        %241 = vmatpush.msra.mxu0 0.0
        %242 = vmatpush.msra.mxu0 0.0
        %243 = vmatpush.msra.mxu0 0.0
        %244 = vmatpush.msra.mxu0 0.0
        %245 = vmatpush.msra.mxu0 0.0
        %246 = vmatpush.msra.mxu0 0.0
        %247 = vmatpush.msra.mxu0 0.0
        %248 = vmatpush.msra.mxu0 0.0
        %249 = vmatpush.msra.mxu0 0.0
        %250 = vmatpush.msra.mxu0 0.0
        %251 = vmatpush.msra.mxu0 0.0
        %252 = vmatpush.msra.mxu0 0.0
        %253 = vmatpush.msra.mxu0 0.0
        %254 = vmatpush.msra.mxu0 0.0
        %v255 = vand.u32 %v209, 4294901760
        %v256 = vsub.f32 %v209, %v255
        %v257 = vand.u32 %v256, 4294901760
        %v258 = vsub.f32 %v256, %v257
        %v259 = vand.u32 %v258, 4294901760
        %260 = vmatpush.msra.mxu0 %v259
        %v261 = vand.u32 %v212, 4294901760
        %262 = vmatmul.f32.gmra.mxu0 %v261
        %v263 = vpop.f32.mrf.mxu0
        %v264 = vadd.f32 %v238, %v263
        %265 = vdwg.mxu0
        %266 = vmatpush.msra.mxu0 0.0
        %267 = vmatpush.msra.mxu0 0.0
        %268 = vmatpush.msra.mxu0 0.0
        %269 = vmatpush.msra.mxu0 0.0
        %270 = vmatpush.msra.mxu0 0.0
        %271 = vmatpush.msra.mxu0 0.0
        %272 = vmatpush.msra.mxu0 0.0
        %273 = vmatpush.msra.mxu0 0.0
        %274 = vmatpush.msra.mxu0 0.0
        %275 = vmatpush.msra.mxu0 0.0
        %276 = vmatpush.msra.mxu0 0.0
        %277 = vmatpush.msra.mxu0 0.0
        %278 = vmatpush.msra.mxu0 0.0
        %279 = vmatpush.msra.mxu0 0.0
        %280 = vmatpush.msra.mxu0 0.0
        %v281 = vand.u32 %v209, 4294901760
        %v282 = vsub.f32 %v209, %v281
        %283 = vmatpush.msra.mxu0 %v282
        %v284 = vand.u32 %v212, 4294901760
        %v285 = vsub.f32 %v212, %v284
        %286 = vmatmul.f32.gmra.mxu0 %v285
        %v287 = vpop.f32.mrf.mxu0
        %v288 = vadd.f32 %v264, %v287
        %289 = vdwg.mxu0
        %290 = vmatpush.msra.mxu0 0.0
        %291 = vmatpush.msra.mxu0 0.0
        %292 = vmatpush.msra.mxu0 0.0
        %293 = vmatpush.msra.mxu0 0.0
        %294 = vmatpush.msra.mxu0 0.0
        %295 = vmatpush.msra.mxu0 0.0
        %296 = vmatpush.msra.mxu0 0.0
        %297 = vmatpush.msra.mxu0 0.0
        %298 = vmatpush.msra.mxu0 0.0
        %299 = vmatpush.msra.mxu0 0.0
        %300 = vmatpush.msra.mxu0 0.0
        %301 = vmatpush.msra.mxu0 0.0
        %302 = vmatpush.msra.mxu0 0.0
        %303 = vmatpush.msra.mxu0 0.0
        %304 = vmatpush.msra.mxu0 0.0
        %v305 = vand.u32 %v209, 4294901760
        %306 = vmatpush.msra.mxu0 %v305
        %v307 = vand.u32 %v212, 4294901760
        %v308 = vsub.f32 %v212, %v307
        %v309 = vand.u32 %v308, 4294901760
        %310 = vmatmul.f32.gmra.mxu0 %v309
        %v311 = vpop.f32.mrf.mxu0
        %v312 = vadd.f32 %v288, %v311
        %313 = vdwg.mxu0
        %314 = vmatpush.msra.mxu0 0.0
        %315 = vmatpush.msra.mxu0 0.0
        %316 = vmatpush.msra.mxu0 0.0
        %317 = vmatpush.msra.mxu0 0.0
        %318 = vmatpush.msra.mxu0 0.0
        %319 = vmatpush.msra.mxu0 0.0
        %320 = vmatpush.msra.mxu0 0.0
        %321 = vmatpush.msra.mxu0 0.0
        %322 = vmatpush.msra.mxu0 0.0
        %323 = vmatpush.msra.mxu0 0.0
        %324 = vmatpush.msra.mxu0 0.0
        %325 = vmatpush.msra.mxu0 0.0
        %326 = vmatpush.msra.mxu0 0.0
        %327 = vmatpush.msra.mxu0 0.0
        %328 = vmatpush.msra.mxu0 0.0
        %v329 = vand.u32 %v209, 4294901760
        %v330 = vsub.f32 %v209, %v329
        %v331 = vand.u32 %v330, 4294901760
        %332 = vmatpush.msra.mxu0 %v331
        %v333 = vand.u32 %v212, 4294901760
        %334 = vmatmul.f32.gmra.mxu0 %v333
        %v335 = vpop.f32.mrf.mxu0
        %v336 = vadd.f32 %v312, %v335
        %337 = vdwg.mxu0
        %338 = vmatpush.msra.mxu0 0.0
        %339 = vmatpush.msra.mxu0 0.0
        %340 = vmatpush.msra.mxu0 0.0
        %341 = vmatpush.msra.mxu0 0.0
        %342 = vmatpush.msra.mxu0 0.0
        %343 = vmatpush.msra.mxu0 0.0
        %344 = vmatpush.msra.mxu0 0.0
        %345 = vmatpush.msra.mxu0 0.0
        %346 = vmatpush.msra.mxu0 0.0
        %347 = vmatpush.msra.mxu0 0.0
        %348 = vmatpush.msra.mxu0 0.0
        %349 = vmatpush.msra.mxu0 0.0
        %350 = vmatpush.msra.mxu0 0.0
        %351 = vmatpush.msra.mxu0 0.0
        %352 = vmatpush.msra.mxu0 0.0
        %v353 = vand.u32 %v209, 4294901760
        %354 = vmatpush.msra.mxu0 %v353
        %v355 = vand.u32 %v212, 4294901760
        %356 = vmatmul.f32.gmra.mxu0 %v355
        %v357 = vpop.f32.mrf.mxu0
        %v358 = vadd.f32 %v336, %v357
        %359 = vdwg.mxu0
        %360 = vst [vmem:[%s191] sm:$0xf] %v358
        %v361 = vld [vmem:[%s195] sm:$0xf]
        %362 = vset.pattern.permute.xlu0 1
        %363 = vperm.xlu0 %362, %v361
        %v364 = vpop.permute.xlu0 %363
        %vm365 = vcmp.eq.s32.totalorder %v201, %v364
        %v366 = vsel %vm365, 1, 0
        %v367 = vcvt.s32.f32 %v366
        %v368 = vld [vmem:[%s166 + $0x8] sm:$0xff]
        %v370 = vsel %vm210, %v367, 0
        %372 = vmatpush.msra.mxu0 0.0
        %373 = vmatpush.msra.mxu0 0.0
        %374 = vmatpush.msra.mxu0 0.0
        %375 = vmatpush.msra.mxu0 0.0
        %376 = vmatpush.msra.mxu0 0.0
        %377 = vmatpush.msra.mxu0 0.0
        %378 = vmatpush.msra.mxu0 0.0
        %379 = vmatpush.msra.mxu0 0.0
        %380 = vmatpush.msra.mxu0 0.0
        %381 = vmatpush.msra.mxu0 0.0
        %382 = vmatpush.msra.mxu0 0.0
        %383 = vmatpush.msra.mxu0 0.0
        %384 = vmatpush.msra.mxu0 0.0
        %385 = vmatpush.msra.mxu0 0.0
        %386 = vmatpush.msra.mxu0 0.0
        %v387 = vand.u32 %v368, 4294901760
        %388 = vmatpush.msra.mxu0 %v387
        %v389 = vand.u32 %v370, 4294901760
        %v390 = vsub.f32 %v370, %v389
        %v391 = vand.u32 %v390, 4294901760
        %v392 = vsub.f32 %v390, %v391
        %v393 = vand.u32 %v392, 4294901760
        %394 = vmatmul.f32.gmra.mxu0 %v393
        %v395 = vpop.f32.mrf.mxu0
        %v396 = vadd.f32 0.0, %v395
        %397 = vdwg.mxu0
        %398 = vmatpush.msra.mxu0 0.0
        %399 = vmatpush.msra.mxu0 0.0
        %400 = vmatpush.msra.mxu0 0.0
        %401 = vmatpush.msra.mxu0 0.0
        %402 = vmatpush.msra.mxu0 0.0
        %403 = vmatpush.msra.mxu0 0.0
        %404 = vmatpush.msra.mxu0 0.0
        %405 = vmatpush.msra.mxu0 0.0
        %406 = vmatpush.msra.mxu0 0.0
        %407 = vmatpush.msra.mxu0 0.0
        %408 = vmatpush.msra.mxu0 0.0
        %409 = vmatpush.msra.mxu0 0.0
        %410 = vmatpush.msra.mxu0 0.0
        %411 = vmatpush.msra.mxu0 0.0
        %412 = vmatpush.msra.mxu0 0.0
        %v413 = vand.u32 %v368, 4294901760
        %v414 = vsub.f32 %v368, %v413
        %v415 = vand.u32 %v414, 4294901760
        %v416 = vsub.f32 %v414, %v415
        %v417 = vand.u32 %v416, 4294901760
        %418 = vmatpush.msra.mxu0 %v417
        %v419 = vand.u32 %v370, 4294901760
        %420 = vmatmul.f32.gmra.mxu0 %v419
        %v421 = vpop.f32.mrf.mxu0
        %v422 = vadd.f32 %v396, %v421
        %423 = vdwg.mxu0
        %424 = vmatpush.msra.mxu0 0.0
        %425 = vmatpush.msra.mxu0 0.0
        %426 = vmatpush.msra.mxu0 0.0
        %427 = vmatpush.msra.mxu0 0.0
        %428 = vmatpush.msra.mxu0 0.0
        %429 = vmatpush.msra.mxu0 0.0
        %430 = vmatpush.msra.mxu0 0.0
        %431 = vmatpush.msra.mxu0 0.0
        %432 = vmatpush.msra.mxu0 0.0
        %433 = vmatpush.msra.mxu0 0.0
        %434 = vmatpush.msra.mxu0 0.0
        %435 = vmatpush.msra.mxu0 0.0
        %436 = vmatpush.msra.mxu0 0.0
        %437 = vmatpush.msra.mxu0 0.0
        %438 = vmatpush.msra.mxu0 0.0
        %v439 = vand.u32 %v368, 4294901760
        %v440 = vsub.f32 %v368, %v439
        %441 = vmatpush.msra.mxu0 %v440
        %v442 = vand.u32 %v370, 4294901760
        %v443 = vsub.f32 %v370, %v442
        %444 = vmatmul.f32.gmra.mxu0 %v443
        %v445 = vpop.f32.mrf.mxu0
        %v446 = vadd.f32 %v422, %v445
        %447 = vdwg.mxu0
        %448 = vmatpush.msra.mxu0 0.0
        %449 = vmatpush.msra.mxu0 0.0
        %450 = vmatpush.msra.mxu0 0.0
        %451 = vmatpush.msra.mxu0 0.0
        %452 = vmatpush.msra.mxu0 0.0
        %453 = vmatpush.msra.mxu0 0.0
        %454 = vmatpush.msra.mxu0 0.0
        %455 = vmatpush.msra.mxu0 0.0
        %456 = vmatpush.msra.mxu0 0.0
        %457 = vmatpush.msra.mxu0 0.0
        %458 = vmatpush.msra.mxu0 0.0
        %459 = vmatpush.msra.mxu0 0.0
        %460 = vmatpush.msra.mxu0 0.0
        %461 = vmatpush.msra.mxu0 0.0
        %462 = vmatpush.msra.mxu0 0.0
        %v463 = vand.u32 %v368, 4294901760
        %464 = vmatpush.msra.mxu0 %v463
        %v465 = vand.u32 %v370, 4294901760
        %v466 = vsub.f32 %v370, %v465
        %v467 = vand.u32 %v466, 4294901760
        %468 = vmatmul.f32.gmra.mxu0 %v467
        %v469 = vpop.f32.mrf.mxu0
        %v470 = vadd.f32 %v446, %v469
        %471 = vdwg.mxu0
        %472 = vmatpush.msra.mxu0 0.0
        %473 = vmatpush.msra.mxu0 0.0
        %474 = vmatpush.msra.mxu0 0.0
        %475 = vmatpush.msra.mxu0 0.0
        %476 = vmatpush.msra.mxu0 0.0
        %477 = vmatpush.msra.mxu0 0.0
        %478 = vmatpush.msra.mxu0 0.0
        %479 = vmatpush.msra.mxu0 0.0
        %480 = vmatpush.msra.mxu0 0.0
        %481 = vmatpush.msra.mxu0 0.0
        %482 = vmatpush.msra.mxu0 0.0
        %483 = vmatpush.msra.mxu0 0.0
        %484 = vmatpush.msra.mxu0 0.0
        %485 = vmatpush.msra.mxu0 0.0
        %486 = vmatpush.msra.mxu0 0.0
        %v487 = vand.u32 %v368, 4294901760
        %v488 = vsub.f32 %v368, %v487
        %v489 = vand.u32 %v488, 4294901760
        %490 = vmatpush.msra.mxu0 %v489
        %v491 = vand.u32 %v370, 4294901760
        %492 = vmatmul.f32.gmra.mxu0 %v491
        %v493 = vpop.f32.mrf.mxu0
        %v494 = vadd.f32 %v470, %v493
        %495 = vdwg.mxu0
        %496 = vmatpush.msra.mxu0 0.0
        %497 = vmatpush.msra.mxu0 0.0
        %498 = vmatpush.msra.mxu0 0.0
        %499 = vmatpush.msra.mxu0 0.0
        %500 = vmatpush.msra.mxu0 0.0
        %501 = vmatpush.msra.mxu0 0.0
        %502 = vmatpush.msra.mxu0 0.0
        %503 = vmatpush.msra.mxu0 0.0
        %504 = vmatpush.msra.mxu0 0.0
        %505 = vmatpush.msra.mxu0 0.0
        %506 = vmatpush.msra.mxu0 0.0
        %507 = vmatpush.msra.mxu0 0.0
        %508 = vmatpush.msra.mxu0 0.0
        %509 = vmatpush.msra.mxu0 0.0
        %510 = vmatpush.msra.mxu0 0.0
        %v511 = vand.u32 %v368, 4294901760
        %512 = vmatpush.msra.mxu0 %v511
        %v513 = vand.u32 %v370, 4294901760
        %514 = vmatmul.f32.gmra.mxu0 %v513
        %v515 = vpop.f32.mrf.mxu0
        %v516 = vadd.f32 %v494, %v515
        %517 = vdwg.mxu0
        %518 = vst [vmem:[%s191 + $0x4] sm:$0xf] %v516
        %s519 = sand.u32 %s95, 1
        %s520 = scalar_lea.sflag [#allocation4], %s519
        %s521 = sand.u32 %s95, 1
        %s522 = smul.addr %s521, 8
        %s523 = scalar_lea.vmem [#allocation5], %s522
        // Predicated region
        $region33: #{tpu_custom_call.1} parent=27 // pred_check
          %p524 = pneg %p105
        $region34: #{tpu_custom_call.1} parent=27 // pred_check_branch
          %526 = sbr.rel (%p524) target = $region36
        $region35: #{tpu_custom_call.1} parent=27 // pred_region
          %s527 = sadd.s32 %s23, %s24
          %s528 = smul.u32 2, %s527
          %530 = vsyncadd %s520, 0
          %s531 = smul.addr %s528, 4
          %s532 = scalar_lea.hbm %s2, %s531
          %s534 = sshll.u32 %s523, 4
          %s535 = int_to_ptr.vmem [resolvable:$true] %s534
          %s536 = sshll.u32 %s532, 4
          %s537 = int_to_ptr.hbm [resolvable:$true] %s536
          %539 = dma.vmem_to_hbm [thread:$0]  %s535, 128, %s537, %s520
        $region36: #{tpu_custom_call.1} parent=27 // pred_fallthru
          _
      $region28: #{tpu_custom_call.1} parent=5 // pred_fallthru
        _
      %p540 = scmp.le.s32.totalorder 2, %s14
      // Predicated region
      $region37: #{tpu_custom_call.1} parent=5 // pred_check
        %p541 = pneg %p540
      $region38: #{tpu_custom_call.1} parent=5 // pred_check_branch
        %543 = sbr.rel (%p541) target = $region40
      $region39: #{tpu_custom_call.1} parent=5 // pred_region
        %s544 = ssub.s32 %s14, 2
        // Predicated region
        $region41: #{tpu_custom_call.1} parent=39 // pred_check
          %p545 = pneg %p111
        $region42: #{tpu_custom_call.1} parent=39 // pred_check_branch
          %547 = sbr.rel (%p545) target = $region44
        $region43: #{tpu_custom_call.1} parent=39 // pred_region
          %s548 = sand.u32 %s96, 1
          %s549 = scalar_lea.sflag [#allocation4], %s548
          %s550 = sand.u32 %s96, 1
          %s551 = smul.addr %s550, 8
          %s552 = scalar_lea.vmem [#allocation5], %s551
          %554 = dma.done %s549, 128
        $region44: #{tpu_custom_call.1} parent=39 // pred_fallthru
          _
      $region40: #{tpu_custom_call.1} parent=5 // pred_fallthru
        _
    $region6: #{tpu_custom_call.1} parent=1 // loop_footer
      %s18 = sadd.s32 1, %s14
    $region7: #{tpu_custom_call.1} parent=1 // loop_footer_branch
      %13 = sbr.rel target = $region3
    $region8: #{tpu_custom_call.1} parent=1 // loop_exit
      _
    %555 = vsyncpa [#allocation3], 1
    %s556 = scalar_lea.sflag [#allocation3], 1
    %557 = vsyncpa %s556, 1
    %558 = vsyncpa [#allocation4], 1
    %s559 = scalar_lea.sflag [#allocation4], 1
    %560 = vsyncpa %s559, 1

</llo_original>
